<compile_context>
chip_gen: v7x
topology: tpu7x:2x2x1
jax: 0.10.0
libtpu: 0.0.40
codegen_flags: <defaults>
</compile_context>

<pallas_src>
import math

import jax
import jax.numpy as jnp
from jax.experimental import pallas as pl
from jax.experimental.pallas import tpu as pltpu


def _round_up(x, m):
    return (x + m - 1) // m * m


def _nbytes(shape, dtype):
    return int(math.prod(shape)) * jnp.dtype(dtype).itemsize


def _vmem_capacity_bytes():
    """Per-TensorCore VMEM; conservative (v7x) fallback if the query fails."""
    try:
        info = pltpu.get_tpu_info()
        cap = int(getattr(info, "vmem_capacity_bytes", 0) or 0)
        if cap > 0:
            return cap
    except Exception:
        pass
    return 64 * 1024 * 1024


def _sigmoid(x):
    # sigmoid(x) == 0.5 * (1 + tanh(x / 2)); single EUP push per element.
    return 0.5 * (jnp.tanh(0.5 * x) + 1.0)


def _tile_need_bytes(block_b, block_h, K_pad, param_dtype, h_dtype):
    """Double-buffer-aware VMEM footprint for one grid step (+ headroom)."""
    w = _nbytes((4, K_pad, block_h), param_dtype)
    xc = _nbytes((block_b, K_pad), param_dtype)
    c0 = _nbytes((block_b, block_h), jnp.float32)
    bias = _nbytes((4, 1, block_h), jnp.float32)
    outs = _nbytes((block_b, block_h), h_dtype) + _nbytes((block_b, block_h), jnp.float32)
    temps = 6 * _nbytes((block_b, block_h), jnp.float32)  # f32 gate temps etc.
    return 2 * (w + xc + c0 + bias) + 2 * outs + temps + (2 << 20)


def _choose_block_h(H_pad, K_pad, block_b, param_dtype, h_dtype, budget):
    units = H_pad // 128
    cands = [128 * m for m in range(units, 0, -1) if units % m == 0]
    fitting = [c for c in cands
               if _tile_need_bytes(block_b, c, K_pad, param_dtype, h_dtype) <= budget]
    if not fitting:
        # TODO(synk): K-split grid axis needed here for huge K; fall back to 128.
        return 128
    best = max(fitting)
    f256 = [c for c in fitting if c % 256 == 0]
    best256 = max(f256) if f256 else 0
    # Prefer a 256-multiple (full MXU passes on v6e/v7x) unless it costs >2x tile size.
    return best256 if best256 * 2 >= best else best


# --------------------------------------------------------------------------
# One-time parameter repack (hoisted out of the per-call path).
# --------------------------------------------------------------------------
def pack_lstm_params(weight_ih, weight_hh, bias=None, *, param_dtype=jnp.bfloat16):
    """weight_ih:(IN,4H), weight_hh:(H,4H), bias:(4H,) -> (4,K_pad,H_pad) bf16, (4,1,H_pad) f32."""
    in_size, four_h = weight_ih.shape
    H = four_h // 4
    K = in_size + H
    K_pad = _round_up(K, 128)
    H_pad = _round_up(H, 128)

    w = jnp.concatenate([weight_ih, weight_hh], axis=0)            # (K, 4H)
    w = w.reshape(K, 4, H).transpose(1, 0, 2)                      # (4, K, H) gate-major [f|i|o|g]
    w = jnp.pad(w, ((0, 0), (0, K_pad - K), (0, H_pad - H))).astype(param_dtype)

    if bias is None:
        b = jnp.zeros((4, 1, H_pad), jnp.float32)
    else:
        b = bias.astype(jnp.float32).reshape(4, 1, H)
        b = jnp.pad(b, ((0, 0), (0, 0), (0, H_pad - H)))
    return w, b


# --------------------------------------------------------------------------
# Kernel
# --------------------------------------------------------------------------
def lstm_cell_kernel(xc_ref, c0_ref, w_ref, b_ref, h1_ref, c1_ref):
    # xc_ref : (TB, K_pad)      bf16   concatenated [x | h0] tile
    # c0_ref : (TB, TH)         f32
    # w_ref  : (4, K_pad, TH)   bf16   gate-major fused [W_ih ; W_hh] (resident over batch tiles)
    # b_ref  : (4, 1, TH)       f32
    xc = xc_ref[...]

    # One MXU matmul per gate over the shared [x|h] activation (f32 accumulate).
    f = jnp.dot(xc, w_ref[0], preferred_element_type=jnp.float32) + b_ref[0]
    i = jnp.dot(xc, w_ref[1], preferred_element_type=jnp.float32) + b_ref[1]
    o = jnp.dot(xc, w_ref[2], preferred_element_type=jnp.float32) + b_ref[2]
    g = jnp.dot(xc, w_ref[3], preferred_element_type=jnp.float32) + b_ref[3]

    c0 = c0_ref[...]
    c1 = _sigmoid(f) * c0 + _sigmoid(i) * jnp.tanh(g)
    h1 = _sigmoid(o) * jnp.tanh(c1)

    c1_ref[...] = c1.astype(c1_ref.dtype)          # f32 cell state
    h1_ref[...] = h1.astype(h1_ref.dtype)


# --------------------------------------------------------------------------
# Wrapper
# --------------------------------------------------------------------------
def lstm_cell(input_, h0, c0, w_packed, b_packed, *, block_b=128, block_h=None):
    """Pallas LSTM cell. Returns (h_1, c_1): h_1 in input dtype, c_1 in f32."""
    B, in_size = input_.shape
    H = h0.shape[-1]
    K = in_size + H
    param_dtype = w_packed.dtype
    h_dtype = input_.dtype

    # ---- alignment / tiling (lane-dense gates & outputs) --------------------
    K_pad = _round_up(K, 128)
    H_pad = _round_up(H, 128)
    assert w_packed.shape == (4, K_pad, H_pad), (w_packed.shape, (4, K_pad, H_pad))
    assert b_packed.shape == (4, 1, H_pad), b_packed.shape

    sub = max(8, 32 // jnp.dtype(param_dtype).itemsize)   # bf16 -> 16 sublane packing
    B_pad = _round_up(B, sub)
    if B_pad <= block_b:
        block_b = B_pad
    else:
        block_b = _round_up(block_b, sub)
        B_pad = _round_up(B_pad, block_b)

    # ---- per-generation VMEM budget -> tile choice --------------------------
    cap = _vmem_capacity_bytes()
    budget = min(cap - (8 << 20), int(0.8 * cap))          # ~51 MiB on v7x, ~102 MiB on v5e/v6e
    bh = _choose_block_h(H_pad, K_pad, block_b, param_dtype, h_dtype, budget)
    if block_h is not None:                                 # optional user cap
        user = max(128, _round_up(min(block_h, H_pad), 128))
        while H_pad % user:
            user -= 128
        bh = min(bh, user)

    nb = B_pad // block_b
    nh = H_pad // bh
    # Give both TensorCores work on multi-core chips for small problems.
    if nb * nh == 1 and H_pad >= 256:
        units = H_pad // 128
        smaller = [128 * m for m in range(units - 1, 0, -1) if units % m == 0]
        if smaller:
            bh = max(smaller)
            nh = H_pad // bh

    need = _tile_need_bytes(block_b, bh, K_pad, param_dtype, h_dtype)
    vmem_limit = int(min(max(need, 32 << 20), cap - (2 << 20)))

    # ---- activation plumbing (cheap; weights were packed once offline) ------
    xc = jnp.concatenate([input_, h0], axis=1).astype(param_dtype)    # (B, K)
    xc = jnp.pad(xc, ((0, B_pad - B), (0, K_pad - K)))
    c0p = jnp.pad(c0.astype(jnp.float32), ((0, B_pad - B), (0, H_pad - H)))

    grid_spec = pltpu.PrefetchScalarGridSpec(
        num_scalar_prefetch=0,
        grid=(nh, nb),                                  # hidden OUTER, batch INNER
        in_specs=[
            pl.BlockSpec((block_b, K_pad), lambda hi, bi: (bi, 0)),        # xc
            pl.BlockSpec((block_b, bh), lambda hi, bi: (bi, hi)),          # c0
            pl.BlockSpec((4, K_pad, bh), lambda hi, bi: (0, 0, hi)),       # W (resident over bi)
            pl.BlockSpec((4, 1, bh), lambda hi, bi: (0, 0, hi)),           # bias
        ],
        out_specs=(
            pl.BlockSpec((block_b, bh), lambda hi, bi: (bi, hi)),          # h1
            pl.BlockSpec((block_b, bh), lambda hi, bi: (bi, hi)),          # c1
        ),
    )

    h1p, c1p = pl.pallas_call(
        lstm_cell_kernel,
        out_shape=(
            jax.ShapeDtypeStruct((B_pad, H_pad), h_dtype),
            jax.ShapeDtypeStruct((B_pad, H_pad), jnp.float32),
        ),
        grid_spec=grid_spec,
        compiler_params=pltpu.CompilerParams(
            dimension_semantics=("parallel", "parallel"),
            vmem_limit_bytes=vmem_limit,
        ),
    )(xc, c0p, w_packed, b_packed)

    return h1p[:B, :H], c1p[:B, :H]


# --------------------------------------------------------------------------
# Pure-JAX reference (same precision policy: bf16 weights, f32 accumulate/gates)
# --------------------------------------------------------------------------
def reference_lstm_cell(input_, h0, c0, weight_ih, weight_hh, bias,
                        *, param_dtype=jnp.bfloat16):
    xc = jnp.concatenate([input_, h0], axis=1).astype(param_dtype)
    w = jnp.concatenate([weight_ih, weight_hh], axis=0).astype(param_dtype)
    gates = jnp.dot(xc, w, preferred_element_type=jnp.float32)
    gates = gates + bias.astype(jnp.float32)[None, :]
    f, i, o, g = jnp.split(gates, 4, axis=1)
    c0 = c0.astype(jnp.float32)
    c1 = jax.nn.sigmoid(f) * c0 + jax.nn.sigmoid(i) * jnp.tanh(g)
    h1 = jax.nn.sigmoid(o) * jnp.tanh(c1)
    return h1.astype(input_.dtype), c1     # cell state kept in f32


def init_params(key, input_size, hidden_size):
    """Mirrors LSTMCell.reset_parameters(): orthogonal W_ih, tiled-eye W_hh, zero bias."""
    a = jax.random.normal(key, (4 * hidden_size, input_size), dtype=jnp.float32)
    q, _ = jnp.linalg.qr(a)
    weight_ih = q.T.astype(jnp.float32)                              # (input_size, 4H)
    weight_hh = jnp.tile(jnp.eye(hidden_size, dtype=jnp.float32), (1, 4))
    bias = jnp.zeros((4 * hidden_size,), dtype=jnp.float32)
    return weight_ih, weight_hh, bias


if __name__ == "__main__":
    B, IN, H = 8, 16, 32
    key = jax.random.PRNGKey(0)
    k_x, k_h, k_c, k_w = jax.random.split(key, 4)

    x = jax.random.normal(k_x, (B, IN), dtype=jnp.float32)
    h0 = jax.random.normal(k_h, (B, H), dtype=jnp.float32)
    c0 = jax.random.normal(k_c, (B, H), dtype=jnp.float32)
    weight_ih, weight_hh, bias = init_params(k_w, IN, H)

    # One-time parameter repack (not on the per-step path).
    w_packed, b_packed = pack_lstm_params(weight_ih, weight_hh, bias)

    cell = jax.jit(lstm_cell)
    h1, c1 = cell(x, h0, c0, w_packed, b_packed)
    jax.block_until_ready((h1, c1))

    h1_ref, c1_ref = reference_lstm_cell(x, h0, c0, weight_ih, weight_hh, bias)
    assert h1.shape == (B, H) and c1.shape == (B, H)
    assert jnp.allclose(h1, h1_ref, atol=2e-3, rtol=2e-3), "h1 mismatch"
    assert jnp.allclose(c1, c1_ref, atol=2e-3, rtol=2e-3), "c1 mismatch"

    print("KERNEL_OK")
</pallas_src>

<mosaic_0001>
module attributes {stable_mosaic.version = 11 : i64} {
  func.func @lstm_cell_kernel(%arg0: i32, %arg1: i32, %arg2: memref<16x128xbf16, #tpu.memory_space<vmem>>, %arg3: memref<16x128xf32, #tpu.memory_space<vmem>>, %arg4: memref<4x128x128xbf16, #tpu.memory_space<vmem>>, %arg5: memref<4x1x128xf32, #tpu.memory_space<vmem>>, %arg6: memref<16x128xf32, #tpu.memory_space<vmem>>, %arg7: memref<16x128xf32, #tpu.memory_space<vmem>>) attributes {dimension_semantics = [#tpu.dimension_semantics<parallel>, #tpu.dimension_semantics<parallel>], iteration_bounds = array<i64: 1, 1>, scalar_prefetch = 0 : i64, scratch_operands = 0 : i64, tpu.core_type = #tpu.core_type<tc>, window_params = [{transform_indices = @transform_0, window_bounds = array<i64: 16, 128>}, {transform_indices = @transform_1, window_bounds = array<i64: 16, 128>}, {transform_indices = @transform_2, window_bounds = array<i64: 4, 128, 128>}, {transform_indices = @transform_3, window_bounds = array<i64: 4, 1, 128>}, {transform_indices = @transform_4, window_bounds = array<i64: 16, 128>}, {transform_indices = @transform_5, window_bounds = array<i64: 16, 128>}]} {
    %c0 = arith.constant 0 : index
    %c0_0 = arith.constant 0 : index
    %0 = vector.load %arg2[%c0, %c0_0] : memref<16x128xbf16, #tpu.memory_space<vmem>>, vector<16x128xbf16>
    %c0_1 = arith.constant 0 : index
    %c0_2 = arith.constant 0 : index
    %c0_3 = arith.constant 0 : index
    %1 = vector.load %arg4[%c0_1, %c0_2, %c0_3] : memref<4x128x128xbf16, #tpu.memory_space<vmem>>, vector<1x128x128xbf16>
    %2 = vector.shape_cast %1 : vector<1x128x128xbf16> to vector<128x128xbf16>
    %cst = arith.constant dense<0.000000e+00> : vector<16x128xf32>
    %3 = tpu.matmul %0, %2, %cst {dimension_numbers = #tpu.dot_dimension_numbers<[1], [0], [0], [1], [0, 0, 1, 1], [], []>} : vector<16x128xbf16>, vector<128x128xbf16>, vector<16x128xf32> -> vector<16x128xf32>
    %c0_4 = arith.constant 0 : index
    %c0_5 = arith.constant 0 : index
    %c0_6 = arith.constant 0 : index
    %4 = vector.load %arg5[%c0_4, %c0_5, %c0_6] : memref<4x1x128xf32, #tpu.memory_space<vmem>>, vector<1x1x128xf32>
    %5 = vector.shape_cast %4 : vector<1x1x128xf32> to vector<1x128xf32>
    %6 = vector.broadcast %5 : vector<1x128xf32> to vector<16x128xf32>
    %7 = arith.addf %3, %6 : vector<16x128xf32>
    %c1 = arith.constant 1 : index
    %c0_7 = arith.constant 0 : index
    %c0_8 = arith.constant 0 : index
    %8 = vector.load %arg4[%c1, %c0_7, %c0_8] : memref<4x128x128xbf16, #tpu.memory_space<vmem>>, vector<1x128x128xbf16>
    %9 = vector.shape_cast %8 : vector<1x128x128xbf16> to vector<128x128xbf16>
    %cst_9 = arith.constant dense<0.000000e+00> : vector<16x128xf32>
    %10 = tpu.matmul %0, %9, %cst_9 {dimension_numbers = #tpu.dot_dimension_numbers<[1], [0], [0], [1], [0, 0, 1, 1], [], []>} : vector<16x128xbf16>, vector<128x128xbf16>, vector<16x128xf32> -> vector<16x128xf32>
    %c1_10 = arith.constant 1 : index
    %c0_11 = arith.constant 0 : index
    %c0_12 = arith.constant 0 : index
    %11 = vector.load %arg5[%c1_10, %c0_11, %c0_12] : memref<4x1x128xf32, #tpu.memory_space<vmem>>, vector<1x1x128xf32>
    %12 = vector.shape_cast %11 : vector<1x1x128xf32> to vector<1x128xf32>
    %13 = vector.broadcast %12 : vector<1x128xf32> to vector<16x128xf32>
    %14 = arith.addf %10, %13 : vector<16x128xf32>
    %c2 = arith.constant 2 : index
    %c0_13 = arith.constant 0 : index
    %c0_14 = arith.constant 0 : index
    %15 = vector.load %arg4[%c2, %c0_13, %c0_14] : memref<4x128x128xbf16, #tpu.memory_space<vmem>>, vector<1x128x128xbf16>
    %16 = vector.shape_cast %15 : vector<1x128x128xbf16> to vector<128x128xbf16>
    %cst_15 = arith.constant dense<0.000000e+00> : vector<16x128xf32>
    %17 = tpu.matmul %0, %16, %cst_15 {dimension_numbers = #tpu.dot_dimension_numbers<[1], [0], [0], [1], [0, 0, 1, 1], [], []>} : vector<16x128xbf16>, vector<128x128xbf16>, vector<16x128xf32> -> vector<16x128xf32>
    %c2_16 = arith.constant 2 : index
    %c0_17 = arith.constant 0 : index
    %c0_18 = arith.constant 0 : index
    %18 = vector.load %arg5[%c2_16, %c0_17, %c0_18] : memref<4x1x128xf32, #tpu.memory_space<vmem>>, vector<1x1x128xf32>
    %19 = vector.shape_cast %18 : vector<1x1x128xf32> to vector<1x128xf32>
    %20 = vector.broadcast %19 : vector<1x128xf32> to vector<16x128xf32>
    %21 = arith.addf %17, %20 : vector<16x128xf32>
    %c3 = arith.constant 3 : index
    %c0_19 = arith.constant 0 : index
    %c0_20 = arith.constant 0 : index
    %22 = vector.load %arg4[%c3, %c0_19, %c0_20] : memref<4x128x128xbf16, #tpu.memory_space<vmem>>, vector<1x128x128xbf16>
    %23 = vector.shape_cast %22 : vector<1x128x128xbf16> to vector<128x128xbf16>
    %cst_21 = arith.constant dense<0.000000e+00> : vector<16x128xf32>
    %24 = tpu.matmul %0, %23, %cst_21 {dimension_numbers = #tpu.dot_dimension_numbers<[1], [0], [0], [1], [0, 0, 1, 1], [], []>} : vector<16x128xbf16>, vector<128x128xbf16>, vector<16x128xf32> -> vector<16x128xf32>
    %c3_22 = arith.constant 3 : index
    %c0_23 = arith.constant 0 : index
    %c0_24 = arith.constant 0 : index
    %25 = vector.load %arg5[%c3_22, %c0_23, %c0_24] : memref<4x1x128xf32, #tpu.memory_space<vmem>>, vector<1x1x128xf32>
    %26 = vector.shape_cast %25 : vector<1x1x128xf32> to vector<1x128xf32>
    %27 = vector.broadcast %26 : vector<1x128xf32> to vector<16x128xf32>
    %28 = arith.addf %24, %27 : vector<16x128xf32>
    %c0_25 = arith.constant 0 : index
    %c0_26 = arith.constant 0 : index
    %29 = vector.load %arg3[%c0_25, %c0_26] : memref<16x128xf32, #tpu.memory_space<vmem>>, vector<16x128xf32>
    %cst_27 = arith.constant 5.000000e-01 : f32
    %30 = vector.broadcast %cst_27 : f32 to vector<16x128xf32>
    %31 = arith.mulf %30, %7 : vector<16x128xf32>
    %32 = math.tanh %31 : vector<16x128xf32>
    %cst_28 = arith.constant 1.000000e+00 : f32
    %33 = vector.broadcast %cst_28 : f32 to vector<16x128xf32>
    %34 = arith.addf %32, %33 : vector<16x128xf32>
    %cst_29 = arith.constant 5.000000e-01 : f32
    %35 = vector.broadcast %cst_29 : f32 to vector<16x128xf32>
    %36 = arith.mulf %35, %34 : vector<16x128xf32>
    %37 = arith.mulf %36, %29 : vector<16x128xf32>
    %cst_30 = arith.constant 5.000000e-01 : f32
    %38 = vector.broadcast %cst_30 : f32 to vector<16x128xf32>
    %39 = arith.mulf %38, %14 : vector<16x128xf32>
    %40 = math.tanh %39 : vector<16x128xf32>
    %cst_31 = arith.constant 1.000000e+00 : f32
    %41 = vector.broadcast %cst_31 : f32 to vector<16x128xf32>
    %42 = arith.addf %40, %41 : vector<16x128xf32>
    %cst_32 = arith.constant 5.000000e-01 : f32
    %43 = vector.broadcast %cst_32 : f32 to vector<16x128xf32>
    %44 = arith.mulf %43, %42 : vector<16x128xf32>
    %45 = math.tanh %28 : vector<16x128xf32>
    %46 = arith.mulf %44, %45 : vector<16x128xf32>
    %47 = arith.addf %37, %46 : vector<16x128xf32>
    %cst_33 = arith.constant 5.000000e-01 : f32
    %48 = vector.broadcast %cst_33 : f32 to vector<16x128xf32>
    %49 = arith.mulf %48, %21 : vector<16x128xf32>
    %50 = math.tanh %49 : vector<16x128xf32>
    %cst_34 = arith.constant 1.000000e+00 : f32
    %51 = vector.broadcast %cst_34 : f32 to vector<16x128xf32>
    %52 = arith.addf %50, %51 : vector<16x128xf32>
    %cst_35 = arith.constant 5.000000e-01 : f32
    %53 = vector.broadcast %cst_35 : f32 to vector<16x128xf32>
    %54 = arith.mulf %53, %52 : vector<16x128xf32>
    %55 = math.tanh %47 : vector<16x128xf32>
    %56 = arith.mulf %54, %55 : vector<16x128xf32>
    %c0_36 = arith.constant 0 : index
    %c0_37 = arith.constant 0 : index
    %57 = vector.load %arg7[%c0_36, %c0_37] : memref<16x128xf32, #tpu.memory_space<vmem>>, vector<16x128xf32>
    tpu.vector_store %arg7[%c0_36, %c0_37], %47 {strides = array<i32>} : memref<16x128xf32, #tpu.memory_space<vmem>>, vector<16x128xf32>,
    %c0_38 = arith.constant 0 : index
    %c0_39 = arith.constant 0 : index
    %58 = vector.load %arg6[%c0_38, %c0_39] : memref<16x128xf32, #tpu.memory_space<vmem>>, vector<16x128xf32>
    tpu.vector_store %arg6[%c0_38, %c0_39], %56 {strides = array<i32>} : memref<16x128xf32, #tpu.memory_space<vmem>>, vector<16x128xf32>,
    return
  }
  func.func @transform_0(%arg0: i32, %arg1: i32) -> (i32, i32) {
    %c0_i32 = arith.constant 0 : i32
    %c0_i32_0 = arith.constant 0 : i32
    return %arg1, %c0_i32 : i32, i32
  }
  func.func @transform_1(%arg0: i32, %arg1: i32) -> (i32, i32) {
    %c0_i32 = arith.constant 0 : i32
    return %arg1, %arg0 : i32, i32
  }
  func.func @transform_2(%arg0: i32, %arg1: i32) -> (i32, i32, i32) {
    %c0_i32 = arith.constant 0 : i32
    %c0_i32_0 = arith.constant 0 : i32
    %c0_i32_1 = arith.constant 0 : i32
    return %c0_i32, %c0_i32_0, %arg0 : i32, i32, i32
  }
  func.func @transform_3(%arg0: i32, %arg1: i32) -> (i32, i32, i32) {
    %c0_i32 = arith.constant 0 : i32
    %c0_i32_0 = arith.constant 0 : i32
    %c0_i32_1 = arith.constant 0 : i32
    return %c0_i32, %c0_i32_0, %arg0 : i32, i32, i32
  }
  func.func @transform_4(%arg0: i32, %arg1: i32) -> (i32, i32) {
    %c0_i32 = arith.constant 0 : i32
    return %arg1, %arg0 : i32, i32
  }
  func.func @transform_5(%arg0: i32, %arg1: i32) -> (i32, i32) {
    %c0_i32 = arith.constant 0 : i32
    return %arg1, %arg0 : i32, i32
  }
}

</mosaic_0001>

<llo_original>
// kernel: lstm_cell.1
$region0: #{lstm_cell.1}
  #allocation0 [shape = 'u32[]', space=smem, size = 0x4, offset = 0x4, fixed_abs, tag = 'smem constant byte address 0x4 - core index']
  #allocation1 [shape = 'u32[144,128]{1,0:T(1,128)}', space=vmem, size = 0x12000, scoped, tag = 'internal scratch']
  %s0 = inlined_call_operand.vmem [shape: bf16[16,128], index: 0, kind: input, shape index: {}]
  %s1 = inlined_call_operand.vmem [shape: f32[16,128], index: 1, kind: input, shape index: {}]
  %s2 = inlined_call_operand.hbm [shape: bf16[4,128,128], index: 2, kind: input, shape index: {}]
  %s3 = inlined_call_operand.vmem [shape: f32[4,1,128], index: 3, kind: input, shape index: {}]
  %s4 = inlined_call_operand.vmem [shape: f32[16,128], index: 4, kind: output, shape index: {0}]
  %s5 = inlined_call_operand.vmem [shape: f32[16,128], index: 5, kind: output, shape index: {1}]
  %6 = xla_tuple %s4, %s5
  %s7 = sld [smem:[#allocation0]]
  $region38: #{lstm_cell.1} parent=0
    _
  %s9 = ssub.s32 1, %s7
  %s10 = scalar_select 0, %s9, %s7
  $region1: #{lstm_cell.1} parent=0
    #allocation2 [shape = 'u8[131072]{0}', space=vmem, size = 0x20000, scoped, tag = 'input window, operand 2, single buffered']
    #allocation3 [shape = 's32[1]{0}', space=sflag, size = 0x4, scoped, tag = 'scoped memory for lstm_cell.1']
    %11 = vsyncpa [#allocation3], 0
    // Predicated region
    $region2: #{lstm_cell.1} parent=1 // pred_check
      _
    $region3: #{lstm_cell.1} parent=1 // pred_check_branch
      %13 = sbr.rel (0) target = $region5
    $region4: #{lstm_cell.1} parent=1 // pred_region
      _
    $region5: #{lstm_cell.1} parent=1 // pred_fallthru
      _
    // Predicated region
    $region6: #{lstm_cell.1} parent=1 // pred_check
      _
    $region7: #{lstm_cell.1} parent=1 // pred_check_branch
      %15 = sbr.rel (0) target = $region9
    $region8: #{lstm_cell.1} parent=1 // pred_region
      _
    $region9: #{lstm_cell.1} parent=1 // pred_fallthru
      _
    // Predicated region
    $region10: #{lstm_cell.1} parent=1 // pred_check
      _
    $region11: #{lstm_cell.1} parent=1 // pred_check_branch
      %17 = sbr.rel (0) target = $region13
    $region12: #{lstm_cell.1} parent=1 // pred_region
      %s19 = ssub.s32 4096, 4096
      %20 = vsyncadd [#allocation3], %s19
      %s21 = sshll.u32 [#allocation2], 4
      %s22 = int_to_ptr.vmem [resolvable:$true] %s21
      %27 = dma.hbm_to_vmem [thread:$0]  %s2, 4096, %s22, [#allocation3], 64, 64, 4
    $region13: #{lstm_cell.1} parent=1 // pred_fallthru
      _
    // Predicated region
    $region14: #{lstm_cell.1} parent=1 // pred_check
      _
    $region15: #{lstm_cell.1} parent=1 // pred_check_branch
      %29 = sbr.rel (0) target = $region17
    $region16: #{lstm_cell.1} parent=1 // pred_region
      _
    $region17: #{lstm_cell.1} parent=1 // pred_fallthru
      _
    // Predicated region
    $region18: #{lstm_cell.1} parent=1 // pred_check
      _
    $region19: #{lstm_cell.1} parent=1 // pred_check_branch
      %31 = sbr.rel (0) target = $region21
    $region20: #{lstm_cell.1} parent=1 // pred_region
      %32 = dma.done [#allocation3], 4096
    $region21: #{lstm_cell.1} parent=1 // pred_fallthru
      _
    %v34 = vld [vmem:[%s0] sm:$0xf]
    %v35 = vld [vmem:[%s0 + $0x4] sm:$0xf]
    %v36 = vld [vmem:[#allocation2] sm:$0xf]
    %v37 = vld [vmem:[#allocation2 + $0x4] sm:$0xf]
    %v38 = vld [vmem:[#allocation2 + $0x8] sm:$0xf]
    %v39 = vld [vmem:[#allocation2 + $0xc] sm:$0xf]
    %v40 = vld [vmem:[#allocation2 + $0x10] sm:$0xf]
    %v41 = vld [vmem:[#allocation2 + $0x14] sm:$0xf]
    %v42 = vld [vmem:[#allocation2 + $0x18] sm:$0xf]
    %v43 = vld [vmem:[#allocation2 + $0x1c] sm:$0xf]
    %v44 = vld [vmem:[#allocation2 + $0x20] sm:$0xf]
    %v45 = vld [vmem:[#allocation2 + $0x24] sm:$0xf]
    %v46 = vld [vmem:[#allocation2 + $0x28] sm:$0xf]
    %v47 = vld [vmem:[#allocation2 + $0x2c] sm:$0xf]
    %v48 = vld [vmem:[#allocation2 + $0x30] sm:$0xf]
    %v49 = vld [vmem:[#allocation2 + $0x34] sm:$0xf]
    %v50 = vld [vmem:[#allocation2 + $0x38] sm:$0xf]
    %v51 = vld [vmem:[#allocation2 + $0x3c] sm:$0xf]
    %v52 = vld [vmem:[%s3] sm:$0x1]
    %v54 = vlaneseq
    %v55 = vshrl.u32 %v54, 7
    %v56 = vsub.s32 0, %v55
    %v57 = vrot.slane %v52, %v56
    %v61 = vunpack.c.l.b16 %v34
    %v62 = vunpack.c.l.b16 %v35
    %v63 = vpack.c.b16 %v62, %v61
    %v81 = vunpack.c.l.b16 %v36
    %v82 = vunpack.c.l.b16 %v37
    %v83 = vunpack.c.l.b16 %v38
    %v84 = vunpack.c.l.b16 %v39
    %v85 = vunpack.c.l.b16 %v40
    %v86 = vunpack.c.l.b16 %v41
    %v87 = vunpack.c.l.b16 %v42
    %v88 = vunpack.c.l.b16 %v43
    %v89 = vunpack.c.l.b16 %v44
    %v90 = vunpack.c.l.b16 %v45
    %v91 = vunpack.c.l.b16 %v46
    %v92 = vunpack.c.l.b16 %v47
    %v93 = vunpack.c.l.b16 %v48
    %v94 = vunpack.c.l.b16 %v49
    %v95 = vunpack.c.l.b16 %v50
    %v96 = vunpack.c.l.b16 %v51
    %v97 = vpack.c.b16 %v82, %v81
    %v98 = vpack.c.b16 %v84, %v83
    %v99 = vpack.c.b16 %v86, %v85
    %v100 = vpack.c.b16 %v88, %v87
    %v101 = vpack.c.b16 %v90, %v89
    %v102 = vpack.c.b16 %v92, %v91
    %v103 = vpack.c.b16 %v94, %v93
    %v104 = vpack.c.b16 %v96, %v95
    %113 = vmatprep.subr.bf16.mxu0 0
    %114 = vmatpush1.bf16.msra.mxu0 %v97
    %115 = vmatprep.subr.bf16.mxu0 0
    %116 = vmatpush1.bf16.msra.mxu0 %v98
    %117 = vmatprep.subr.bf16.mxu0 0
    %118 = vmatpush1.bf16.msra.mxu0 %v99
    %119 = vmatprep.subr.bf16.mxu0 0
    %120 = vmatpush1.bf16.msra.mxu0 %v100
    %121 = vmatprep.subr.bf16.mxu0 0
    %122 = vmatpush1.bf16.msra.mxu0 %v101
    %123 = vmatprep.subr.bf16.mxu0 0
    %124 = vmatpush1.bf16.msra.mxu0 %v102
    %125 = vmatprep.subr.bf16.mxu0 0
    %126 = vmatpush1.bf16.msra.mxu0 %v103
    %127 = vmatprep.subr.bf16.mxu0 0
    %128 = vmatpush1.bf16.msra.mxu0 %v104
    %129 = vmatprep.subr.bf16.mxu0 0
    %130 = vmatpush1.bf16.msra.mxu0 0
    %131 = vmatprep.subr.bf16.mxu0 0
    %132 = vmatpush1.bf16.msra.mxu0 0
    %133 = vmatprep.subr.bf16.mxu0 0
    %134 = vmatpush1.bf16.msra.mxu0 0
    %135 = vmatprep.subr.bf16.mxu0 0
    %136 = vmatpush1.bf16.msra.mxu0 0
    %137 = vmatprep.subr.bf16.mxu0 0
    %138 = vmatpush1.bf16.msra.mxu0 0
    %139 = vmatprep.subr.bf16.mxu0 0
    %140 = vmatpush1.bf16.msra.mxu0 0
    %141 = vmatprep.subr.bf16.mxu0 0
    %142 = vmatpush1.bf16.msra.mxu0 0
    %143 = vmatprep.subr.bf16.mxu0 0
    %144 = vmatpush1.bf16.msra.mxu0 0
    %145 = vmatprep.mubr.bf16.mxu0 0
    %146 = vmatmul.mubr.bf16.gmra.mrb[0].mxu0 %v63
    %v147 = vpop.f32.mrb[0].mxu0
    %v148 = vadd.f32 %v57, %v147
    %v149 = vpop.f32.mrb[0].mxu0
    %v150 = vpop.f32.mrb[0].mxu0
    %v151 = vadd.f32 %v57, %v150
    %v152 = vpop.f32.mrb[0].mxu0
    %153 = vdwg.mxu0
    %s154 = scalar_lea.vmem [#allocation2], 64
    %v155 = vld [vmem:[%s154] sm:$0xf]
    %v156 = vld [vmem:[%s154 + $0x4] sm:$0xf]
    %v157 = vld [vmem:[%s154 + $0x8] sm:$0xf]
    %v158 = vld [vmem:[%s154 + $0xc] sm:$0xf]
    %v159 = vld [vmem:[%s154 + $0x10] sm:$0xf]
    %v160 = vld [vmem:[%s154 + $0x14] sm:$0xf]
    %v161 = vld [vmem:[%s154 + $0x18] sm:$0xf]
    %v162 = vld [vmem:[%s154 + $0x1c] sm:$0xf]
    %v163 = vld [vmem:[%s154 + $0x20] sm:$0xf]
    %v164 = vld [vmem:[%s154 + $0x24] sm:$0xf]
    %v165 = vld [vmem:[%s154 + $0x28] sm:$0xf]
    %v166 = vld [vmem:[%s154 + $0x2c] sm:$0xf]
    %v167 = vld [vmem:[%s154 + $0x30] sm:$0xf]
    %v168 = vld [vmem:[%s154 + $0x34] sm:$0xf]
    %v169 = vld [vmem:[%s154 + $0x38] sm:$0xf]
    %v170 = vld [vmem:[%s154 + $0x3c] sm:$0xf]
    %s171 = scalar_lea.vmem %s3, 1
    %v172 = vld [vmem:[%s171] sm:$0x1]
    %v174 = vlaneseq
    %v175 = vshrl.u32 %v174, 7
    %v176 = vsub.s32 0, %v175
    %v177 = vrot.slane %v172, %v176
    %v195 = vunpack.c.l.b16 %v155
    %v196 = vunpack.c.l.b16 %v156
    %v197 = vunpack.c.l.b16 %v157
    %v198 = vunpack.c.l.b16 %v158
    %v199 = vunpack.c.l.b16 %v159
    %v200 = vunpack.c.l.b16 %v160
    %v201 = vunpack.c.l.b16 %v161
    %v202 = vunpack.c.l.b16 %v162
    %v203 = vunpack.c.l.b16 %v163
    %v204 = vunpack.c.l.b16 %v164
    %v205 = vunpack.c.l.b16 %v165
    %v206 = vunpack.c.l.b16 %v166
    %v207 = vunpack.c.l.b16 %v167
    %v208 = vunpack.c.l.b16 %v168
    %v209 = vunpack.c.l.b16 %v169
    %v210 = vunpack.c.l.b16 %v170
    %v211 = vpack.c.b16 %v196, %v195
    %v212 = vpack.c.b16 %v198, %v197
    %v213 = vpack.c.b16 %v200, %v199
    %v214 = vpack.c.b16 %v202, %v201
    %v215 = vpack.c.b16 %v204, %v203
    %v216 = vpack.c.b16 %v206, %v205
    %v217 = vpack.c.b16 %v208, %v207
    %v218 = vpack.c.b16 %v210, %v209
    %227 = vmatprep.subr.bf16.mxu0 0
    %228 = vmatpush1.bf16.msra.mxu0 %v211
    %229 = vmatprep.subr.bf16.mxu0 0
    %230 = vmatpush1.bf16.msra.mxu0 %v212
    %231 = vmatprep.subr.bf16.mxu0 0
    %232 = vmatpush1.bf16.msra.mxu0 %v213
    %233 = vmatprep.subr.bf16.mxu0 0
    %234 = vmatpush1.bf16.msra.mxu0 %v214
    %235 = vmatprep.subr.bf16.mxu0 0
    %236 = vmatpush1.bf16.msra.mxu0 %v215
    %237 = vmatprep.subr.bf16.mxu0 0
    %238 = vmatpush1.bf16.msra.mxu0 %v216
    %239 = vmatprep.subr.bf16.mxu0 0
    %240 = vmatpush1.bf16.msra.mxu0 %v217
    %241 = vmatprep.subr.bf16.mxu0 0
    %242 = vmatpush1.bf16.msra.mxu0 %v218
    %243 = vmatprep.subr.bf16.mxu0 0
    %244 = vmatpush1.bf16.msra.mxu0 0
    %245 = vmatprep.subr.bf16.mxu0 0
    %246 = vmatpush1.bf16.msra.mxu0 0
    %247 = vmatprep.subr.bf16.mxu0 0
    %248 = vmatpush1.bf16.msra.mxu0 0
    %249 = vmatprep.subr.bf16.mxu0 0
    %250 = vmatpush1.bf16.msra.mxu0 0
    %251 = vmatprep.subr.bf16.mxu0 0
    %252 = vmatpush1.bf16.msra.mxu0 0
    %253 = vmatprep.subr.bf16.mxu0 0
    %254 = vmatpush1.bf16.msra.mxu0 0
    %255 = vmatprep.subr.bf16.mxu0 0
    %256 = vmatpush1.bf16.msra.mxu0 0
    %257 = vmatprep.subr.bf16.mxu0 0
    %258 = vmatpush1.bf16.msra.mxu0 0
    %259 = vmatprep.mubr.bf16.mxu0 0
    %260 = vmatmul.mubr.bf16.gmra.mrb[0].mxu0 %v63
    %v261 = vpop.f32.mrb[0].mxu0
    %v262 = vadd.f32 %v177, %v261
    %v263 = vpop.f32.mrb[0].mxu0
    %v264 = vpop.f32.mrb[0].mxu0
    %v265 = vadd.f32 %v177, %v264
    %v266 = vpop.f32.mrb[0].mxu0
    %267 = vdwg.mxu0
    %s268 = scalar_lea.vmem [#allocation2], 128
    %v269 = vld [vmem:[%s268] sm:$0xf]
    %v270 = vld [vmem:[%s268 + $0x4] sm:$0xf]
    %v271 = vld [vmem:[%s268 + $0x8] sm:$0xf]
    %v272 = vld [vmem:[%s268 + $0xc] sm:$0xf]
    %v273 = vld [vmem:[%s268 + $0x10] sm:$0xf]
    %v274 = vld [vmem:[%s268 + $0x14] sm:$0xf]
    %v275 = vld [vmem:[%s268 + $0x18] sm:$0xf]
    %v276 = vld [vmem:[%s268 + $0x1c] sm:$0xf]
    %v277 = vld [vmem:[%s268 + $0x20] sm:$0xf]
    %v278 = vld [vmem:[%s268 + $0x24] sm:$0xf]
    %v279 = vld [vmem:[%s268 + $0x28] sm:$0xf]
    %v280 = vld [vmem:[%s268 + $0x2c] sm:$0xf]
    %v281 = vld [vmem:[%s268 + $0x30] sm:$0xf]
    %v282 = vld [vmem:[%s268 + $0x34] sm:$0xf]
    %v283 = vld [vmem:[%s268 + $0x38] sm:$0xf]
    %v284 = vld [vmem:[%s268 + $0x3c] sm:$0xf]
    %s285 = scalar_lea.vmem %s3, 2
    %v286 = vld [vmem:[%s285] sm:$0x1]
    %v288 = vlaneseq
    %v289 = vshrl.u32 %v288, 7
    %v290 = vsub.s32 0, %v289
    %v291 = vrot.slane %v286, %v290
    %v309 = vunpack.c.l.b16 %v269
    %v310 = vunpack.c.l.b16 %v270
    %v311 = vunpack.c.l.b16 %v271
    %v312 = vunpack.c.l.b16 %v272
    %v313 = vunpack.c.l.b16 %v273
    %v314 = vunpack.c.l.b16 %v274
    %v315 = vunpack.c.l.b16 %v275
    %v316 = vunpack.c.l.b16 %v276
    %v317 = vunpack.c.l.b16 %v277
    %v318 = vunpack.c.l.b16 %v278
    %v319 = vunpack.c.l.b16 %v279
    %v320 = vunpack.c.l.b16 %v280
    %v321 = vunpack.c.l.b16 %v281
    %v322 = vunpack.c.l.b16 %v282
    %v323 = vunpack.c.l.b16 %v283
    %v324 = vunpack.c.l.b16 %v284
    %v325 = vpack.c.b16 %v310, %v309
    %v326 = vpack.c.b16 %v312, %v311
    %v327 = vpack.c.b16 %v314, %v313
    %v328 = vpack.c.b16 %v316, %v315
    %v329 = vpack.c.b16 %v318, %v317
    %v330 = vpack.c.b16 %v320, %v319
    %v331 = vpack.c.b16 %v322, %v321
    %v332 = vpack.c.b16 %v324, %v323
    %341 = vmatprep.subr.bf16.mxu0 0
    %342 = vmatpush1.bf16.msra.mxu0 %v325
    %343 = vmatprep.subr.bf16.mxu0 0
    %344 = vmatpush1.bf16.msra.mxu0 %v326
    %345 = vmatprep.subr.bf16.mxu0 0
    %346 = vmatpush1.bf16.msra.mxu0 %v327
    %347 = vmatprep.subr.bf16.mxu0 0
    %348 = vmatpush1.bf16.msra.mxu0 %v328
    %349 = vmatprep.subr.bf16.mxu0 0
    %350 = vmatpush1.bf16.msra.mxu0 %v329
    %351 = vmatprep.subr.bf16.mxu0 0
    %352 = vmatpush1.bf16.msra.mxu0 %v330
    %353 = vmatprep.subr.bf16.mxu0 0
    %354 = vmatpush1.bf16.msra.mxu0 %v331
    %355 = vmatprep.subr.bf16.mxu0 0
    %356 = vmatpush1.bf16.msra.mxu0 %v332
    %357 = vmatprep.subr.bf16.mxu0 0
    %358 = vmatpush1.bf16.msra.mxu0 0
    %359 = vmatprep.subr.bf16.mxu0 0
    %360 = vmatpush1.bf16.msra.mxu0 0
    %361 = vmatprep.subr.bf16.mxu0 0
    %362 = vmatpush1.bf16.msra.mxu0 0
    %363 = vmatprep.subr.bf16.mxu0 0
    %364 = vmatpush1.bf16.msra.mxu0 0
    %365 = vmatprep.subr.bf16.mxu0 0
    %366 = vmatpush1.bf16.msra.mxu0 0
    %367 = vmatprep.subr.bf16.mxu0 0
    %368 = vmatpush1.bf16.msra.mxu0 0
    %369 = vmatprep.subr.bf16.mxu0 0
    %370 = vmatpush1.bf16.msra.mxu0 0
    %371 = vmatprep.subr.bf16.mxu0 0
    %372 = vmatpush1.bf16.msra.mxu0 0
    %373 = vmatprep.mubr.bf16.mxu0 0
    %374 = vmatmul.mubr.bf16.gmra.mrb[0].mxu0 %v63
    %v375 = vpop.f32.mrb[0].mxu0
    %v376 = vadd.f32 %v291, %v375
    %v377 = vpop.f32.mrb[0].mxu0
    %v378 = vpop.f32.mrb[0].mxu0
    %v379 = vadd.f32 %v291, %v378
    %v380 = vpop.f32.mrb[0].mxu0
    %381 = vdwg.mxu0
    %s382 = scalar_lea.vmem [#allocation2], 192
    %v383 = vld [vmem:[%s382] sm:$0xf]
    %v384 = vld [vmem:[%s382 + $0x4] sm:$0xf]
    %v385 = vld [vmem:[%s382 + $0x8] sm:$0xf]
    %v386 = vld [vmem:[%s382 + $0xc] sm:$0xf]
    %v387 = vld [vmem:[%s382 + $0x10] sm:$0xf]
    %v388 = vld [vmem:[%s382 + $0x14] sm:$0xf]
    %v389 = vld [vmem:[%s382 + $0x18] sm:$0xf]
    %v390 = vld [vmem:[%s382 + $0x1c] sm:$0xf]
    %v391 = vld [vmem:[%s382 + $0x20] sm:$0xf]
    %v392 = vld [vmem:[%s382 + $0x24] sm:$0xf]
    %v393 = vld [vmem:[%s382 + $0x28] sm:$0xf]
    %v394 = vld [vmem:[%s382 + $0x2c] sm:$0xf]
    %v395 = vld [vmem:[%s382 + $0x30] sm:$0xf]
    %v396 = vld [vmem:[%s382 + $0x34] sm:$0xf]
    %v397 = vld [vmem:[%s382 + $0x38] sm:$0xf]
    %v398 = vld [vmem:[%s382 + $0x3c] sm:$0xf]
    %s399 = scalar_lea.vmem %s3, 3
    %v400 = vld [vmem:[%s399] sm:$0x1]
    %v402 = vlaneseq
    %v403 = vshrl.u32 %v402, 7
    %v404 = vsub.s32 0, %v403
    %v405 = vrot.slane %v400, %v404
    %v423 = vunpack.c.l.b16 %v383
    %v424 = vunpack.c.l.b16 %v384
    %v425 = vunpack.c.l.b16 %v385
    %v426 = vunpack.c.l.b16 %v386
    %v427 = vunpack.c.l.b16 %v387
    %v428 = vunpack.c.l.b16 %v388
    %v429 = vunpack.c.l.b16 %v389
    %v430 = vunpack.c.l.b16 %v390
    %v431 = vunpack.c.l.b16 %v391
    %v432 = vunpack.c.l.b16 %v392
    %v433 = vunpack.c.l.b16 %v393
    %v434 = vunpack.c.l.b16 %v394
    %v435 = vunpack.c.l.b16 %v395
    %v436 = vunpack.c.l.b16 %v396
    %v437 = vunpack.c.l.b16 %v397
    %v438 = vunpack.c.l.b16 %v398
    %v439 = vpack.c.b16 %v424, %v423
    %v440 = vpack.c.b16 %v426, %v425
    %v441 = vpack.c.b16 %v428, %v427
    %v442 = vpack.c.b16 %v430, %v429
    %v443 = vpack.c.b16 %v432, %v431
    %v444 = vpack.c.b16 %v434, %v433
    %v445 = vpack.c.b16 %v436, %v435
    %v446 = vpack.c.b16 %v438, %v437
    %455 = vmatprep.subr.bf16.mxu0 0
    %456 = vmatpush1.bf16.msra.mxu0 %v439
    %457 = vmatprep.subr.bf16.mxu0 0
    %458 = vmatpush1.bf16.msra.mxu0 %v440
    %459 = vmatprep.subr.bf16.mxu0 0
    %460 = vmatpush1.bf16.msra.mxu0 %v441
    %461 = vmatprep.subr.bf16.mxu0 0
    %462 = vmatpush1.bf16.msra.mxu0 %v442
    %463 = vmatprep.subr.bf16.mxu0 0
    %464 = vmatpush1.bf16.msra.mxu0 %v443
    %465 = vmatprep.subr.bf16.mxu0 0
    %466 = vmatpush1.bf16.msra.mxu0 %v444
    %467 = vmatprep.subr.bf16.mxu0 0
    %468 = vmatpush1.bf16.msra.mxu0 %v445
    %469 = vmatprep.subr.bf16.mxu0 0
    %470 = vmatpush1.bf16.msra.mxu0 %v446
    %471 = vmatprep.subr.bf16.mxu0 0
    %472 = vmatpush1.bf16.msra.mxu0 0
    %473 = vmatprep.subr.bf16.mxu0 0
    %474 = vmatpush1.bf16.msra.mxu0 0
    %475 = vmatprep.subr.bf16.mxu0 0
    %476 = vmatpush1.bf16.msra.mxu0 0
    %477 = vmatprep.subr.bf16.mxu0 0
    %478 = vmatpush1.bf16.msra.mxu0 0
    %479 = vmatprep.subr.bf16.mxu0 0
    %480 = vmatpush1.bf16.msra.mxu0 0
    %481 = vmatprep.subr.bf16.mxu0 0
    %482 = vmatpush1.bf16.msra.mxu0 0
    %483 = vmatprep.subr.bf16.mxu0 0
    %484 = vmatpush1.bf16.msra.mxu0 0
    %485 = vmatprep.subr.bf16.mxu0 0
    %486 = vmatpush1.bf16.msra.mxu0 0
    %487 = vmatprep.mubr.bf16.mxu0 0
    %488 = vmatmul.mubr.bf16.gmra.mrb[0].mxu0 %v63
    %v489 = vpop.f32.mrb[0].mxu0
    %v490 = vadd.f32 %v405, %v489
    %v491 = vpop.f32.mrb[0].mxu0
    %v492 = vpop.f32.mrb[0].mxu0
    %v493 = vadd.f32 %v405, %v492
    %v494 = vpop.f32.mrb[0].mxu0
    %495 = vdwg.mxu0
    %v496 = vld [vmem:[%s1] sm:$0xff]
    %v497 = vld [vmem:[%s1 + $0x8] sm:$0xff]
    %v498 = vmul.f32 %v148, 0.5
    %v499 = vmul.f32 %v151, 0.5
    %v500 = vtanh.pop %v498
    %v501 = vtanh.pop %v499
    %v502 = vadd.f32 %v500, 1.0
    %v503 = vadd.f32 %v501, 1.0
    %v504 = vmul.f32 %v502, 0.5
    %v505 = vmul.f32 %v503, 0.5
    %v506 = vmul.f32 %v504, %v496
    %v507 = vmul.f32 %v505, %v497
    %v508 = vmul.f32 %v262, 0.5
    %v509 = vmul.f32 %v265, 0.5
    %v510 = vtanh.pop %v508
    %v511 = vtanh.pop %v509
    %v512 = vadd.f32 %v510, 1.0
    %v513 = vadd.f32 %v511, 1.0
    %v514 = vmul.f32 %v512, 0.5
    %v515 = vmul.f32 %v513, 0.5
    %v516 = vtanh.pop %v490
    %v517 = vtanh.pop %v493
    %v518 = vmul.f32 %v514, %v516
    %v519 = vmul.f32 %v515, %v517
    %v520 = vadd.f32 %v506, %v518
    %v521 = vadd.f32 %v507, %v519
    %v522 = vmul.f32 %v376, 0.5
    %v523 = vmul.f32 %v379, 0.5
    %v524 = vtanh.pop %v522
    %v525 = vtanh.pop %v523
    %v526 = vadd.f32 %v524, 1.0
    %v527 = vadd.f32 %v525, 1.0
    %v528 = vmul.f32 %v526, 0.5
    %v529 = vmul.f32 %v527, 0.5
    %v530 = vtanh.pop %v520
    %v531 = vtanh.pop %v521
    %v532 = vmul.f32 %v528, %v530
    %v533 = vmul.f32 %v529, %v531
    %534 = vst [vmem:[%s5] sm:$0xff] %v520
    %535 = vst [vmem:[%s5 + $0x8] sm:$0xff] %v521
    %536 = vst [vmem:[%s4] sm:$0xff] %v532
    %537 = vst [vmem:[%s4 + $0x8] sm:$0xff] %v533
    // Predicated region
    $region22: #{lstm_cell.1} parent=1 // pred_check
      _
    $region23: #{lstm_cell.1} parent=1 // pred_check_branch
      %539 = sbr.rel (0) target = $region25
    $region24: #{lstm_cell.1} parent=1 // pred_region
      _
    $region25: #{lstm_cell.1} parent=1 // pred_fallthru
      _
    // Predicated region
    $region26: #{lstm_cell.1} parent=1 // pred_check
      _
    $region27: #{lstm_cell.1} parent=1 // pred_check_branch
      %541 = sbr.rel (0) target = $region29
    $region28: #{lstm_cell.1} parent=1 // pred_region
      _
    $region29: #{lstm_cell.1} parent=1 // pred_fallthru
      _
    // Predicated region
    $region30: #{lstm_cell.1} parent=1 // pred_check
      _
    $region31: #{lstm_cell.1} parent=1 // pred_check_branch
      %543 = sbr.rel (0) target = $region33
    $region32: #{lstm_cell.1} parent=1 // pred_region
      _
    $region33: #{lstm_cell.1} parent=1 // pred_fallthru
      _
    // Predicated region
    $region34: #{lstm_cell.1} parent=1 // pred_check
      _
    $region35: #{lstm_cell.1} parent=1 // pred_check_branch
      %545 = sbr.rel (0) target = $region37
    $region36: #{lstm_cell.1} parent=1 // pred_region
      _
    $region37: #{lstm_cell.1} parent=1 // pred_fallthru
      _
    %546 = vsyncpa [#allocation3], 1

</llo_original>
